<compile_context>
chip_gen: v7x
topology: tpu7x:2x2x1
jax: 0.10.0
libtpu: 0.0.40
codegen_flags: <defaults>
</compile_context>

<pallas_src>
import jax
import jax.numpy as jnp
from jax.experimental import pallas as pl
from jax.experimental.pallas import tpu as pltpu


_LANE_CANDIDATES = (8192, 4096, 2048, 1024, 512, 256, 128)
# ~2 MiB of f32 per array tile -> 3 arrays * 2 pipeline buffers = 12 MiB VMEM.
_TILE_TARGET_ELEMS = (2 * 1024 * 1024) // 4


def _ema_kernel(alpha_ref, x_ref, h_ref, out_ref):
    # alpha_ref: SMEM (1,) scalar; x/h/out: VMEM (block_rows, lane_width) tiles.
    a = jnp.abs(alpha_ref[0])
    h = h_ref[...]
    # h + a*(x - h) == a*x + (1 - a)*h, with one fewer multiply per vreg.
    out_ref[...] = h + a * (x_ref[...] - h)


def _ema_2d(x2d, h2d, alpha):
    """Run the EMA kernel over a lane-dense 2-D slab of shape (rows, lw)."""
    rows, lw = x2d.shape

    # Block rows: ~2 MiB per array, multiple of 8, capped at the full extent.
    br = max(8, (_TILE_TARGET_ELEMS // lw) // 8 * 8)
    br = min(br, rows)  # if br == rows the block equals the full dim (always legal)

    grid = (pl.cdiv(rows, br),)  # last block (if partial) is masked by Pallas

    return pl.pallas_call(
        _ema_kernel,
        out_shape=jax.ShapeDtypeStruct((rows, lw), x2d.dtype),
        grid_spec=pltpu.PrefetchScalarGridSpec(
            num_scalar_prefetch=0,
            grid=grid,
            in_specs=[
                pl.BlockSpec(memory_space=pltpu.SMEM),        # alpha scalar
                pl.BlockSpec((br, lw), lambda i: (i, 0)),      # x tile
                pl.BlockSpec((br, lw), lambda i: (i, 0)),      # hidden tile
            ],
            out_specs=pl.BlockSpec((br, lw), lambda i: (i, 0)),
        ),
        compiler_params=pltpu.CompilerParams(
            dimension_semantics=("parallel",),
        ),
    )(alpha, x2d, h2d)


def ema_forward(x, hidden, alpha):
    """x, hidden: float32 arrays of identical shape (e.g. NCHW).
    alpha: float32 array of shape (1,).
    Returns |alpha|*x + (1-|alpha|)*hidden, same shape/dtype as x."""
    assert x.shape == hidden.shape and x.dtype == hidden.dtype
    orig_shape = x.shape
    total = x.size
    alpha = alpha.astype(x.dtype)

    # Pick the widest lane width that divides the element count -> no padding.
    lw = None
    for cand in _LANE_CANDIDATES:
        if total % cand == 0:
            lw = cand
            break

    if lw is not None:
        # Common path: zero-copy reshape to a lane-dense slab, no pad / slice.
        x2d = x.reshape(total // lw, lw)
        h2d = hidden.reshape(total // lw, lw)
        out = _ema_2d(x2d, h2d, alpha)
        return out.reshape(orig_shape)

    # Ragged fallback (element count not a multiple of 128): minimal pad.
    # TODO(synk): could avoid the pad with a masked-tail store for huge ragged inputs.
    lw = 128
    padded = pl.cdiv(total, lw) * lw
    xf = jnp.pad(x.reshape(-1), (0, padded - total)).reshape(padded // lw, lw)
    hf = jnp.pad(hidden.reshape(-1), (0, padded - total)).reshape(padded // lw, lw)
    out = _ema_2d(xf, hf, alpha)
    return out.reshape(-1)[:total].reshape(orig_shape)


if __name__ == "__main__":
    key = jax.random.PRNGKey(0)

    # Deterministic parameter init, matching EMA(alpha=0.3).
    alpha = jnp.asarray([0.3], dtype=jnp.float32)

    def ref_fn(x, h):
        a = jnp.abs(alpha)[0]
        return a * x + (1.0 - a) * h

    # Shapes exercise: single-block fast case, multi-step pipelined grid, and
    # the ragged (non-multiple-of-128) fallback.
    shapes = [(2, 4, 16, 16), (4, 16, 128, 128), (2, 3, 5, 7)]
    for shape in shapes:
        key, kx, kh = jax.random.split(key, 3)
        x = jax.random.normal(kx, shape, dtype=jnp.float32)
        hidden = jax.random.normal(kh, shape, dtype=jnp.float32)

        out = ema_forward(x, hidden, alpha)
        jax.block_until_ready(out)

        assert out.shape == x.shape
        assert jnp.allclose(out, ref_fn(x, hidden), atol=1e-5, rtol=1e-5), shape

    print("KERNEL_OK")
</pallas_src>

<mosaic_0001>
module attributes {stable_mosaic.version = 11 : i64} {
  func.func @_ema_kernel(%arg0: i32, %arg1: memref<1xf32, #tpu.memory_space<smem>>, %arg2: memref<1x2048xf32, #tpu.memory_space<vmem>>, %arg3: memref<1x2048xf32, #tpu.memory_space<vmem>>, %arg4: memref<1x2048xf32, #tpu.memory_space<vmem>>) attributes {dimension_semantics = [#tpu.dimension_semantics<parallel>], iteration_bounds = array<i64: 1>, scalar_prefetch = 0 : i64, scratch_operands = 0 : i64, tpu.core_type = #tpu.core_type<tc>, window_params = [{transform_indices = @transform_0, window_bounds = array<i64: 1>}, {transform_indices = @transform_1, window_bounds = array<i64: 1, 2048>}, {transform_indices = @transform_2, window_bounds = array<i64: 1, 2048>}, {transform_indices = @transform_3, window_bounds = array<i64: 1, 2048>}]} {
    %c0 = arith.constant 0 : index
    %0 = memref.load %arg1[%c0] : memref<1xf32, #tpu.memory_space<smem>>
    %1 = math.absf %0 : f32
    %c0_0 = arith.constant 0 : index
    %c0_1 = arith.constant 0 : index
    %2 = vector.load %arg3[%c0_0, %c0_1] : memref<1x2048xf32, #tpu.memory_space<vmem>>, vector<1x2048xf32>
    %c0_2 = arith.constant 0 : index
    %c0_3 = arith.constant 0 : index
    %3 = vector.load %arg2[%c0_2, %c0_3] : memref<1x2048xf32, #tpu.memory_space<vmem>>, vector<1x2048xf32>
    %4 = arith.subf %3, %2 : vector<1x2048xf32>
    %5 = vector.broadcast %1 : f32 to vector<1x2048xf32>
    %6 = arith.mulf %5, %4 : vector<1x2048xf32>
    %7 = arith.addf %2, %6 : vector<1x2048xf32>
    %c0_4 = arith.constant 0 : index
    %c0_5 = arith.constant 0 : index
    %8 = vector.load %arg4[%c0_4, %c0_5] : memref<1x2048xf32, #tpu.memory_space<vmem>>, vector<1x2048xf32>
    tpu.vector_store %arg4[%c0_4, %c0_5], %7 {strides = array<i32>} : memref<1x2048xf32, #tpu.memory_space<vmem>>, vector<1x2048xf32>,
    return
  }
  func.func @transform_0(%arg0: i32) -> i32 {
    %c0_i32 = arith.constant 0 : i32
    %c0_i32_0 = arith.constant 0 : i32
    return %c0_i32 : i32
  }
  func.func @transform_1(%arg0: i32) -> (i32, i32) {
    %c0_i32 = arith.constant 0 : i32
    %c0_i32_0 = arith.constant 0 : i32
    return %arg0, %c0_i32 : i32, i32
  }
  func.func @transform_2(%arg0: i32) -> (i32, i32) {
    %c0_i32 = arith.constant 0 : i32
    %c0_i32_0 = arith.constant 0 : i32
    return %arg0, %c0_i32 : i32, i32
  }
  func.func @transform_3(%arg0: i32) -> (i32, i32) {
    %c0_i32 = arith.constant 0 : i32
    %c0_i32_0 = arith.constant 0 : i32
    return %arg0, %c0_i32 : i32, i32
  }
}

</mosaic_0001>

<llo_original>
// kernel: tpu_custom_call.1
$region0: #{tpu_custom_call.1}
  #allocation0 [shape = 'u32[]', space=smem, size = 0x4, offset = 0x4, fixed_abs, tag = 'smem constant byte address 0x4 - core index']
  #allocation1 [shape = 'u32[144,128]{1,0:T(1,128)}', space=vmem, size = 0x12000, scoped, tag = 'internal scratch']
  #allocation2 [shape = 'f32[1]{0:T(128)S(6)}', space=smem, size = 0x200, scoped, tag = 'scoped memory for tpu_custom_call.1']
  %s0 = inlined_call_operand.<no memory space> [shape: f32[1], index: 0, kind: input, shape index: {}]
  %s1 = inlined_call_operand.hbm [shape: f32[1,2048], index: 1, kind: input, shape index: {}]
  %s2 = inlined_call_operand.hbm [shape: f32[1,2048], index: 2, kind: input, shape index: {}]
  %s3 = inlined_call_operand.hbm [shape: f32[1,2048], index: 3, kind: output, shape index: {}]
  %s4 = sld [smem:[#allocation0]]
  $region30: #{tpu_custom_call.1} parent=0
    _
  %s6 = ssub.s32 1, %s4
  %s7 = scalar_select 0, %s6, %s4
  %8 = sst [smem:[#allocation2]] %s0
  $region1: #{tpu_custom_call.1} parent=0
    #allocation3 [shape = 'u8[8192]{0}', space=vmem, size = 0x2000, scoped, tag = 'input window, operand 1, single buffered']
    #allocation4 [shape = 's32[1]{0}', space=sflag, size = 0x4, scoped, tag = 'scoped memory for tpu_custom_call.1']
    #allocation5 [shape = 's32[1]{0}', space=sflag, size = 0x4, scoped, tag = 'scoped memory for tpu_custom_call.1']
    #allocation6 [shape = 'u8[8192]{0}', space=vmem, size = 0x2000, scoped, tag = 'input window, operand 2, single buffered']
    #allocation7 [shape = 's32[1]{0}', space=sflag, size = 0x4, scoped, tag = 'scoped memory for tpu_custom_call.1']
    #allocation8 [shape = 'u8[8192]{0}', space=vmem, size = 0x2000, scoped, tag = 'output window, operand 0, single buffered']
    %9 = vsyncpa [#allocation4], 0
    %10 = vsyncpa [#allocation7], 0
    %11 = vsyncpa [#allocation5], 0
    // Predicated region
    $region2: #{tpu_custom_call.1} parent=1 // pred_check
      _
    $region3: #{tpu_custom_call.1} parent=1 // pred_check_branch
      %13 = sbr.rel (0) target = $region5
    $region4: #{tpu_custom_call.1} parent=1 // pred_region
      _
    $region5: #{tpu_custom_call.1} parent=1 // pred_fallthru
      _
    // Predicated region
    $region6: #{tpu_custom_call.1} parent=1 // pred_check
      _
    $region7: #{tpu_custom_call.1} parent=1 // pred_check_branch
      %15 = sbr.rel (0) target = $region9
    $region8: #{tpu_custom_call.1} parent=1 // pred_region
      %s17 = ssub.s32 256, 256
      %18 = vsyncadd [#allocation4], %s17
      %s20 = sshll.u32 [#allocation3], 4
      %s21 = int_to_ptr.vmem [resolvable:$true] %s20
      %23 = dma.hbm_to_vmem [thread:$0]  %s1, 256, %s21, [#allocation4]
    $region9: #{tpu_custom_call.1} parent=1 // pred_fallthru
      _
    // Predicated region
    $region10: #{tpu_custom_call.1} parent=1 // pred_check
      _
    $region11: #{tpu_custom_call.1} parent=1 // pred_check_branch
      %25 = sbr.rel (0) target = $region13
    $region12: #{tpu_custom_call.1} parent=1 // pred_region
      %s27 = ssub.s32 256, 256
      %28 = vsyncadd [#allocation7], %s27
      %s30 = sshll.u32 [#allocation6], 4
      %s31 = int_to_ptr.vmem [resolvable:$true] %s30
      %33 = dma.hbm_to_vmem [thread:$0]  %s2, 256, %s31, [#allocation7]
    $region13: #{tpu_custom_call.1} parent=1 // pred_fallthru
      _
    // Predicated region
    $region14: #{tpu_custom_call.1} parent=1 // pred_check
      _
    $region15: #{tpu_custom_call.1} parent=1 // pred_check_branch
      %35 = sbr.rel (0) target = $region17
    $region16: #{tpu_custom_call.1} parent=1 // pred_region
      %36 = dma.done [#allocation4], 256
    $region17: #{tpu_custom_call.1} parent=1 // pred_fallthru
      _
    // Predicated region
    $region18: #{tpu_custom_call.1} parent=1 // pred_check
      _
    $region19: #{tpu_custom_call.1} parent=1 // pred_check_branch
      %38 = sbr.rel (0) target = $region21
    $region20: #{tpu_custom_call.1} parent=1 // pred_region
      %39 = dma.done [#allocation7], 256
    $region21: #{tpu_custom_call.1} parent=1 // pred_fallthru
      _
    %s40 = sld [smem:[#allocation2]]
    %s41 = sand.u32 2147483647, %s40
    %v42 = vld [vmem:[#allocation6] sm:$0xff]
    %v43 = vld [vmem:[#allocation6 + $0x8] sm:$0xff]
    %v44 = vld [vmem:[#allocation3] sm:$0xff]
    %v45 = vld [vmem:[#allocation3 + $0x8] sm:$0xff]
    %v46 = vsub.f32 %v44, %v42
    %v47 = vsub.f32 %v45, %v43
    %v48 = vstv %s41
    %v49 = vmul.f32 %v48, %v46
    %v50 = vmul.f32 %v48, %v47
    %v51 = vadd.f32 %v42, %v49
    %v52 = vadd.f32 %v43, %v50
    %53 = vst [vmem:[#allocation8] sm:$0xff] %v51
    %54 = vst [vmem:[#allocation8 + $0x8] sm:$0xff] %v52
    // Predicated region
    $region22: #{tpu_custom_call.1} parent=1 // pred_check
      _
    $region23: #{tpu_custom_call.1} parent=1 // pred_check_branch
      %56 = sbr.rel (0) target = $region25
    $region24: #{tpu_custom_call.1} parent=1 // pred_region
      %s58 = ssub.s32 256, 256
      %59 = vsyncadd [#allocation5], %s58
      %s61 = sshll.u32 [#allocation8], 4
      %s62 = int_to_ptr.vmem [resolvable:$true] %s61
      %64 = dma.vmem_to_hbm [thread:$0]  %s62, 256, %s3, [#allocation5]
    $region25: #{tpu_custom_call.1} parent=1 // pred_fallthru
      _
    // Predicated region
    $region26: #{tpu_custom_call.1} parent=1 // pred_check
      _
    $region27: #{tpu_custom_call.1} parent=1 // pred_check_branch
      %66 = sbr.rel (0) target = $region29
    $region28: #{tpu_custom_call.1} parent=1 // pred_region
      %67 = dma.done [#allocation5], 256
    $region29: #{tpu_custom_call.1} parent=1 // pred_fallthru
      _
    %68 = vsyncpa [#allocation4], 1
    %69 = vsyncpa [#allocation7], 1
    %70 = vsyncpa [#allocation5], 1

</llo_original>
